<compile_context>
chip_gen: v5e
topology: v5e:2x2
jax: 0.10.0
libtpu: 0.0.40
codegen_flags: <defaults>
</compile_context>

<pallas_src>
import functools

import jax
import jax.numpy as jnp
from jax.experimental import pallas as pl
from jax.experimental.pallas import tpu as pltpu


def _linear_relu_bn_dropout_kernel(seed_ref, x_ref, v_ref, g_ref, b_ref,
                                   gamma_ref, beta_ref, o_ref,
                                   *, dropout_rate, training, bn_eps,
                                   out_total, tile_out):
    j = pl.program_id(0)                      # OUT-tile index

    x = x_ref[...]                            # [B, IN]        f32
    v = v_ref[...]                            # [TILE_OUT, IN] f32 (weight_norm "v")
    g = g_ref[...]                            # [TILE_OUT, 1]  f32 (weight_norm "g")

    # --- weight norm: W = g * v / ||v||_2 per output row (torch default dim=0) ---
    inv_norm = jax.lax.rsqrt(jnp.sum(v * v, axis=1, keepdims=True))   # [TILE_OUT, 1]
    w = v * (g * inv_norm)                                            # [TILE_OUT, IN]

    # --- linear: y = x @ W^T + b  (contract over IN directly; bf16 MXU, f32 acc) ---
    y = jax.lax.dot_general(
        x.astype(jnp.bfloat16), w.astype(jnp.bfloat16),
        dimension_numbers=(((1,), (1,)), ((), ())),
        preferred_element_type=jnp.float32)                           # [B, TILE_OUT]
    y = y + b_ref[...]

    # --- ReLU ---
    y = jnp.maximum(y, 0.0)

    # --- BatchNorm1d ---
    if training:
        batch = y.shape[0]
        s1 = jnp.sum(y, axis=0, keepdims=True)                        # [1, TILE_OUT]
        s2 = jnp.sum(y * y, axis=0, keepdims=True)                    # [1, TILE_OUT]
        mean = s1 * (1.0 / batch)
        var = jnp.maximum(s2 * (1.0 / batch) - mean * mean, 0.0)      # biased var, clamped
        y = (y - mean) * jax.lax.rsqrt(var + bn_eps)
    else:
        # eval mode with freshly-initialized running stats (mean=0, var=1)
        y = y * jax.lax.rsqrt(jnp.float32(1.0 + bn_eps))
    y = y * gamma_ref[...] + beta_ref[...]

    # --- Dropout (training only) ---
    if training and dropout_rate > 0.0:
        keep_prob = 1.0 - float(dropout_rate)
        inv_keep = 1.0 / keep_prob
        bsz, tw = y.shape
        row = jax.lax.broadcasted_iota(jnp.int32, (bsz, tw), 0)
        col = jax.lax.broadcasted_iota(jnp.int32, (bsz, tw), 1) + j * tile_out
        idx = row * out_total + col + seed_ref[0] * jnp.int32(1000003)
        # murmur3-style finalizer on the global element index
        h = jax.lax.bitcast_convert_type(idx, jnp.uint32)
        h = h ^ (h >> 16)
        h = h * jnp.uint32(0x85EBCA6B)
        h = h ^ (h >> 13)
        h = h * jnp.uint32(0xC2B2AE35)
        h = h ^ (h >> 16)
        # uniform [0, 1) via mantissa bit trick
        mant = (h >> 9) | jnp.uint32(0x3F800000)
        u = jax.lax.bitcast_convert_type(mant, jnp.float32) - 1.0
        keep = u < keep_prob
        y = jnp.where(keep, y * inv_keep, 0.0)

    o_ref[...] = y


def linear_relu_bn_dropout(x, v, g, b, gamma, beta, seed,
                           *, dropout_rate, training=True, tile_out=128):
    B, IN = x.shape
    OUT = v.shape[0]
    assert OUT % tile_out == 0, "OUT must be a multiple of tile_out (lane-dense tiles)"

    kernel = functools.partial(
        _linear_relu_bn_dropout_kernel,
        dropout_rate=float(dropout_rate),
        training=bool(training),
        bn_eps=1e-5,
        out_total=int(OUT),
        tile_out=int(tile_out),
    )

    grid_spec = pltpu.PrefetchScalarGridSpec(
        num_scalar_prefetch=1,                 # seed lands in SMEM
        grid=(OUT // tile_out,),
        in_specs=[
            pl.BlockSpec((B, IN), lambda j, seed: (0, 0)),          # x (full batch resident)
            pl.BlockSpec((tile_out, IN), lambda j, seed: (j, 0)),   # v tile
            pl.BlockSpec((tile_out, 1), lambda j, seed: (j, 0)),    # g tile
            pl.BlockSpec((1, tile_out), lambda j, seed: (0, j)),    # bias tile
            pl.BlockSpec((1, tile_out), lambda j, seed: (0, j)),    # gamma tile
            pl.BlockSpec((1, tile_out), lambda j, seed: (0, j)),    # beta tile
        ],
        out_specs=pl.BlockSpec((B, tile_out), lambda j, seed: (0, j)),
    )

    return pl.pallas_call(
        kernel,
        out_shape=jax.ShapeDtypeStruct((B, OUT), jnp.float32),
        grid_spec=grid_spec,
        compiler_params=pltpu.CompilerParams(
            dimension_semantics=("parallel",)),   # OUT tiles independent -> megacore OK
    )(seed, x, v, g, b, gamma, beta)


if __name__ == "__main__":
    # Small but lane-friendly shapes: B multiple of 8, IN/OUT multiples of 128.
    B, IN, OUT = 8, 128, 256
    dropout_rate = 0.1

    key = jax.random.PRNGKey(0)
    k_w, k_b, k_x = jax.random.split(key, 3)

    # Deterministic parameter init mimicking nn.Linear + weight_norm:
    #   v = initial Linear weight, g = ||v||_2 per output row (weight_norm init)
    bound = 1.0 / (IN ** 0.5)
    w0 = jax.random.uniform(k_w, (OUT, IN), jnp.float32, -bound, bound)
    v = w0
    g = jnp.sqrt(jnp.sum(w0 * w0, axis=1, keepdims=True))              # [OUT, 1]
    b = jax.random.uniform(k_b, (1, OUT), jnp.float32, -bound, bound)  # [1, OUT]
    # BatchNorm1d affine params at init
    gamma = jnp.ones((1, OUT), jnp.float32)
    beta = jnp.zeros((1, OUT), jnp.float32)

    x = jax.random.normal(k_x, (B, IN), jnp.float32)
    seed = jnp.array([0], dtype=jnp.int32)

    out = linear_relu_bn_dropout(x, v, g, b, gamma, beta, seed,
                                 dropout_rate=dropout_rate, training=True)
    jax.block_until_ready(out)
    assert out.shape == (B, OUT) and out.dtype == jnp.float32
    assert bool(jnp.all(jnp.isfinite(out)))
    print("KERNEL_OK")
</pallas_src>

<mosaic_0001>
module attributes {stable_mosaic.version = 11 : i64} {
  func.func @_linear_relu_bn_dropout_kernel(%arg0: i32, %arg1: memref<1xi32, #tpu.memory_space<smem>>, %arg2: memref<8x128xf32, #tpu.memory_space<vmem>>, %arg3: memref<128x128xf32, #tpu.memory_space<vmem>>, %arg4: memref<128x1xf32, #tpu.memory_space<vmem>>, %arg5: memref<1x128xf32, #tpu.memory_space<vmem>>, %arg6: memref<1x128xf32, #tpu.memory_space<vmem>>, %arg7: memref<1x128xf32, #tpu.memory_space<vmem>>, %arg8: memref<8x128xf32, #tpu.memory_space<vmem>>) attributes {dimension_semantics = [#tpu.dimension_semantics<parallel>], iteration_bounds = array<i64: 2>, scalar_prefetch = 1 : i64, scratch_operands = 0 : i64, tpu.core_type = #tpu.core_type<tc>, window_params = [{pipeline_mode = #tpu.pipeline_mode<synchronous>, transform_indices = @transform_0, window_bounds = array<i64: 8, 128>}, {transform_indices = @transform_1, window_bounds = array<i64: 128, 128>}, {transform_indices = @transform_2, window_bounds = array<i64: 128, 1>}, {transform_indices = @transform_3, window_bounds = array<i64: 1, 128>}, {transform_indices = @transform_4, window_bounds = array<i64: 1, 128>}, {transform_indices = @transform_5, window_bounds = array<i64: 1, 128>}, {transform_indices = @transform_6, window_bounds = array<i64: 8, 128>}]} {
    %c0 = arith.constant 0 : index
    %c0_0 = arith.constant 0 : index
    %0 = vector.load %arg2[%c0, %c0_0] : memref<8x128xf32, #tpu.memory_space<vmem>>, vector<8x128xf32>
    %c0_1 = arith.constant 0 : index
    %c0_2 = arith.constant 0 : index
    %1 = vector.load %arg3[%c0_1, %c0_2] : memref<128x128xf32, #tpu.memory_space<vmem>>, vector<128x128xf32>
    %c0_3 = arith.constant 0 : index
    %c0_4 = arith.constant 0 : index
    %2 = vector.load %arg4[%c0_3, %c0_4] : memref<128x1xf32, #tpu.memory_space<vmem>>, vector<128x1xf32>
    %3 = arith.mulf %1, %1 : vector<128x128xf32>
    %cst = arith.constant dense<0.000000e+00> : vector<128xf32>
    %4 = vector.multi_reduction <add>, %3, %cst [1] : vector<128x128xf32> to vector<128xf32>
    %5 = vector.shape_cast %4 : vector<128xf32> to vector<128x1xf32>
    %6 = math.rsqrt %5 : vector<128x1xf32>
    %7 = arith.mulf %2, %6 : vector<128x1xf32>
    %8 = vector.broadcast %7 : vector<128x1xf32> to vector<128x128xf32>
    %9 = arith.mulf %1, %8 : vector<128x128xf32>
    %10 = arith.truncf %0 : vector<8x128xf32> to vector<8x128xbf16>
    %11 = arith.truncf %9 : vector<128x128xf32> to vector<128x128xbf16>
    %cst_5 = arith.constant dense<0.000000e+00> : vector<8x128xf32>
    %12 = tpu.matmul %10, %11, %cst_5 {dimension_numbers = #tpu.dot_dimension_numbers<[1], [1], [0], [0], [0, 0, 1, 0], [], []>} : vector<8x128xbf16>, vector<128x128xbf16>, vector<8x128xf32> -> vector<8x128xf32>
    %c0_6 = arith.constant 0 : index
    %c0_7 = arith.constant 0 : index
    %13 = vector.load %arg5[%c0_6, %c0_7] : memref<1x128xf32, #tpu.memory_space<vmem>>, vector<1x128xf32>
    %14 = vector.broadcast %13 : vector<1x128xf32> to vector<8x128xf32>
    %15 = arith.addf %12, %14 : vector<8x128xf32>
    %cst_8 = arith.constant 0.000000e+00 : f32
    %16 = vector.broadcast %cst_8 : f32 to vector<8x128xf32>
    %17 = arith.maximumf %15, %16 : vector<8x128xf32>
    %cst_9 = arith.constant dense<0.000000e+00> : vector<128xf32>
    %18 = vector.multi_reduction <add>, %17, %cst_9 [0] : vector<8x128xf32> to vector<128xf32>
    %19 = vector.shape_cast %18 : vector<128xf32> to vector<1x128xf32>
    %20 = arith.mulf %17, %17 : vector<8x128xf32>
    %cst_10 = arith.constant dense<0.000000e+00> : vector<128xf32>
    %21 = vector.multi_reduction <add>, %20, %cst_10 [0] : vector<8x128xf32> to vector<128xf32>
    %22 = vector.shape_cast %21 : vector<128xf32> to vector<1x128xf32>
    %cst_11 = arith.constant 1.250000e-01 : f32
    %23 = vector.broadcast %cst_11 : f32 to vector<1x128xf32>
    %24 = arith.mulf %19, %23 : vector<1x128xf32>
    %cst_12 = arith.constant 1.250000e-01 : f32
    %25 = vector.broadcast %cst_12 : f32 to vector<1x128xf32>
    %26 = arith.mulf %22, %25 : vector<1x128xf32>
    %27 = arith.mulf %24, %24 : vector<1x128xf32>
    %28 = arith.subf %26, %27 : vector<1x128xf32>
    %cst_13 = arith.constant 0.000000e+00 : f32
    %29 = vector.broadcast %cst_13 : f32 to vector<1x128xf32>
    %30 = arith.maximumf %28, %29 : vector<1x128xf32>
    %31 = vector.broadcast %24 : vector<1x128xf32> to vector<8x128xf32>
    %32 = arith.subf %17, %31 : vector<8x128xf32>
    %cst_14 = arith.constant 9.99999974E-6 : f32
    %33 = vector.broadcast %cst_14 : f32 to vector<1x128xf32>
    %34 = arith.addf %30, %33 : vector<1x128xf32>
    %35 = math.rsqrt %34 : vector<1x128xf32>
    %36 = vector.broadcast %35 : vector<1x128xf32> to vector<8x128xf32>
    %37 = arith.mulf %32, %36 : vector<8x128xf32>
    %c0_15 = arith.constant 0 : index
    %c0_16 = arith.constant 0 : index
    %38 = vector.load %arg6[%c0_15, %c0_16] : memref<1x128xf32, #tpu.memory_space<vmem>>, vector<1x128xf32>
    %39 = vector.broadcast %38 : vector<1x128xf32> to vector<8x128xf32>
    %40 = arith.mulf %37, %39 : vector<8x128xf32>
    %c0_17 = arith.constant 0 : index
    %c0_18 = arith.constant 0 : index
    %41 = vector.load %arg7[%c0_17, %c0_18] : memref<1x128xf32, #tpu.memory_space<vmem>>, vector<1x128xf32>
    %42 = vector.broadcast %41 : vector<1x128xf32> to vector<8x128xf32>
    %43 = arith.addf %40, %42 : vector<8x128xf32>
    %44 = tpu.iota {dimensions = array<i32: 0>} : vector<8x128xi32>
    %45 = tpu.iota {dimensions = array<i32: 1>} : vector<8x128xi32>
    %c128_i32 = arith.constant 128 : i32
    %46 = arith.muli %arg0, %c128_i32 : i32
    %47 = vector.broadcast %46 : i32 to vector<8x128xi32>
    %48 = arith.addi %45, %47 : vector<8x128xi32>
    %c256_i32 = arith.constant 256 : i32
    %49 = vector.broadcast %c256_i32 : i32 to vector<8x128xi32>
    %50 = arith.muli %44, %49 : vector<8x128xi32>
    %51 = arith.addi %50, %48 : vector<8x128xi32>
    %c0_19 = arith.constant 0 : index
    %52 = memref.load %arg1[%c0_19] : memref<1xi32, #tpu.memory_space<smem>>
    %c1000003_i32 = arith.constant 1000003 : i32
    %53 = arith.muli %52, %c1000003_i32 : i32
    %54 = vector.broadcast %53 : i32 to vector<8x128xi32>
    %55 = arith.addi %51, %54 : vector<8x128xi32>
    %56 = tpu.bitcast %55 : vector<8x128xi32> -> vector<8x128xi32>
    %c16_i32 = arith.constant 16 : i32
    %57 = vector.broadcast %c16_i32 : i32 to vector<8x128xi32>
    %58 = arith.shrui %56, %57 : vector<8x128xi32>
    %59 = arith.xori %56, %58 : vector<8x128xi32>
    %c-2048144789_i32 = arith.constant -2048144789 : i32
    %60 = vector.broadcast %c-2048144789_i32 : i32 to vector<8x128xi32>
    %61 = arith.muli %59, %60 : vector<8x128xi32>
    %c13_i32 = arith.constant 13 : i32
    %62 = vector.broadcast %c13_i32 : i32 to vector<8x128xi32>
    %63 = arith.shrui %61, %62 : vector<8x128xi32>
    %64 = arith.xori %61, %63 : vector<8x128xi32>
    %c-1028477387_i32 = arith.constant -1028477387 : i32
    %65 = vector.broadcast %c-1028477387_i32 : i32 to vector<8x128xi32>
    %66 = arith.muli %64, %65 : vector<8x128xi32>
    %c16_i32_20 = arith.constant 16 : i32
    %67 = vector.broadcast %c16_i32_20 : i32 to vector<8x128xi32>
    %68 = arith.shrui %66, %67 : vector<8x128xi32>
    %69 = arith.xori %66, %68 : vector<8x128xi32>
    %c9_i32 = arith.constant 9 : i32
    %70 = vector.broadcast %c9_i32 : i32 to vector<8x128xi32>
    %71 = arith.shrui %69, %70 : vector<8x128xi32>
    %c1065353216_i32 = arith.constant 1065353216 : i32
    %72 = vector.broadcast %c1065353216_i32 : i32 to vector<8x128xi32>
    %73 = arith.ori %71, %72 : vector<8x128xi32>
    %74 = tpu.bitcast %73 : vector<8x128xi32> -> vector<8x128xf32>
    %cst_21 = arith.constant 1.000000e+00 : f32
    %75 = vector.broadcast %cst_21 : f32 to vector<8x128xf32>
    %76 = arith.subf %74, %75 : vector<8x128xf32>
    %cst_22 = arith.constant 0.899999976 : f32
    %77 = vector.broadcast %cst_22 : f32 to vector<8x128xf32>
    %78 = arith.cmpf olt, %76, %77 : vector<8x128xf32>
    %cst_23 = arith.constant 1.11111116 : f32
    %79 = vector.broadcast %cst_23 : f32 to vector<8x128xf32>
    %80 = arith.mulf %43, %79 : vector<8x128xf32>
    %cst_24 = arith.constant 0.000000e+00 : f32
    %81 = vector.broadcast %cst_24 : f32 to vector<8x128xf32>
    %82 = arith.select %78, %80, %81 : vector<8x128xi1>, vector<8x128xf32>
    %c0_25 = arith.constant 0 : index
    %c0_26 = arith.constant 0 : index
    %83 = vector.load %arg8[%c0_25, %c0_26] : memref<8x128xf32, #tpu.memory_space<vmem>>, vector<8x128xf32>
    tpu.vector_store %arg8[%c0_25, %c0_26], %82 {strides = array<i32>} : memref<8x128xf32, #tpu.memory_space<vmem>>, vector<8x128xf32>,
    return
  }
  func.func @transform_0(%arg0: i32, %arg1: memref<1xi32, #tpu.memory_space<smem>>) -> (i32, i32) {
    %c0_i32 = arith.constant 0 : i32
    %c0_i32_0 = arith.constant 0 : i32
    %c0_i32_1 = arith.constant 0 : i32
    return %c0_i32, %c0_i32_0 : i32, i32
  }
  func.func @transform_1(%arg0: i32, %arg1: memref<1xi32, #tpu.memory_space<smem>>) -> (i32, i32) {
    %c0_i32 = arith.constant 0 : i32
    %c0_i32_0 = arith.constant 0 : i32
    return %arg0, %c0_i32 : i32, i32
  }
  func.func @transform_2(%arg0: i32, %arg1: memref<1xi32, #tpu.memory_space<smem>>) -> (i32, i32) {
    %c0_i32 = arith.constant 0 : i32
    %c0_i32_0 = arith.constant 0 : i32
    return %arg0, %c0_i32 : i32, i32
  }
  func.func @transform_3(%arg0: i32, %arg1: memref<1xi32, #tpu.memory_space<smem>>) -> (i32, i32) {
    %c0_i32 = arith.constant 0 : i32
    %c0_i32_0 = arith.constant 0 : i32
    return %c0_i32, %arg0 : i32, i32
  }
  func.func @transform_4(%arg0: i32, %arg1: memref<1xi32, #tpu.memory_space<smem>>) -> (i32, i32) {
    %c0_i32 = arith.constant 0 : i32
    %c0_i32_0 = arith.constant 0 : i32
    return %c0_i32, %arg0 : i32, i32
  }
  func.func @transform_5(%arg0: i32, %arg1: memref<1xi32, #tpu.memory_space<smem>>) -> (i32, i32) {
    %c0_i32 = arith.constant 0 : i32
    %c0_i32_0 = arith.constant 0 : i32
    return %c0_i32, %arg0 : i32, i32
  }
  func.func @transform_6(%arg0: i32, %arg1: memref<1xi32, #tpu.memory_space<smem>>) -> (i32, i32) {
    %c0_i32 = arith.constant 0 : i32
    %c0_i32_0 = arith.constant 0 : i32
    return %c0_i32, %arg0 : i32, i32
  }
}

</mosaic_0001>

<llo_original>
// kernel: tpu_custom_call.1
$region0: #{tpu_custom_call.1}
  #allocation0 [shape = 'u32[]', space=smem, size = 0x4, offset = 0x4, fixed_abs, tag = 'smem constant byte address 0x4 - core index']
  #allocation1 [shape = 'u32[72,128]{1,0:T(1,128)}', space=vmem, size = 0x9000, scoped, tag = 'internal scratch']
  #allocation2 [shape = 's32[1]{0}', space=sflag, size = 0x4, scoped, tag = 'scoped memory for tpu_custom_call.1']
  #allocation3 [shape = 's32[1]{0:T(128)S(6)}', space=smem, size = 0x200, scoped, tag = 'prefetched SMEM operand 0']
  %s0 = inlined_call_operand.<no memory space> [shape: s32[1], index: 0, kind: input, shape index: {}]
  %s1 = inlined_call_operand.hbm [shape: f32[8,128], index: 1, kind: input, shape index: {}]
  %s2 = inlined_call_operand.vmem [shape: f32[256,128], index: 2, kind: input, shape index: {}]
  %s3 = inlined_call_operand.vmem [shape: f32[256,1], index: 3, kind: input, shape index: {}]
  %s4 = inlined_call_operand.vmem [shape: f32[1,256], index: 4, kind: input, shape index: {}]
  %s5 = inlined_call_operand.vmem [shape: f32[1,256], index: 5, kind: input, shape index: {}]
  %s6 = inlined_call_operand.hbm [shape: f32[1,256], index: 6, kind: input, shape index: {}]
  %s7 = inlined_call_operand.hbm [shape: f32[8,256], index: 7, kind: output, shape index: {}]
  %s8 = sld [smem:[#allocation0]]
  $region65: #{tpu_custom_call.1} parent=0
    _
  %s10 = ssub.s32 1, %s8
  %s11 = scalar_select 0, %s10, %s8
  %12 = sst [smem:[#allocation3]] %s0
  $region1: #{tpu_custom_call.1} parent=0
    #allocation4 [shape = 'u8[4096]{0}', space=vmem, size = 0x1000, scoped, tag = 'input window, operand 1, single buffered']
    #allocation5 [shape = 's32[2]{0}', space=sflag, size = 0x8, scoped, tag = 'scoped memory for tpu_custom_call.1']
    #allocation6 [shape = 's32[2]{0}', space=sflag, size = 0x8, scoped, tag = 'scoped memory for tpu_custom_call.1']
    #allocation7 [shape = 'u8[1024]{0}', space=vmem, size = 0x400, scoped, tag = 'input window, operand 6']
    #allocation8 [shape = 's32[2]{0}', space=sflag, size = 0x8, scoped, tag = 'scoped memory for tpu_custom_call.1']
    #allocation9 [shape = 'u8[8192]{0}', space=vmem, size = 0x2000, scoped, tag = 'output window, operand 0']
    %13 = vsyncpa [#allocation5], 0
    %14 = vsyncpa [#allocation8], 0
    %s15 = scalar_lea.sflag [#allocation8], 1
    %16 = vsyncpa %s15, 0
    %17 = vsyncpa [#allocation6], 0
    %s18 = scalar_lea.sflag [#allocation6], 1
    %19 = vsyncpa %s18, 0
    loop: start=0, step=1, limit=4
    $region2: #{tpu_custom_call.1} parent=1 // loop_pre_header
      _
    $region3: #{tpu_custom_call.1} parent=1 // loop_header
      %s21 = sphi 0, %s25
      %p22 = scmp.ge.s32.totalorder %s21, 4
      %s29 = sphi 0, %s29
      %s31 = sphi 0, %s29
      %s32 = sphi 0, %s31
      %s46 = sphi 0, %s32
      %s52 = sphi 0, %s54
      %s55 = sphi 0, %s52
      %s56 = sphi 0, %s55
      %s72 = sphi 0, %s56
      %s78 = sphi 0, %s80
      %s81 = sphi 0, %s78
      %s82 = sphi 0, %s81
      %s98 = sphi 0, %s82
      %s104 = sphi 0, %s106
      %s107 = sphi 0, %s104
      %s108 = sphi 0, %s107
      %s124 = sphi 0, %s108
      %s130 = sphi 0, %s132
      %s133 = sphi 0, %s130
      %s134 = sphi 0, %s133
      %s150 = sphi 0, %s134
      %s156 = sphi 0, %s158
      %s159 = sphi 0, %s156
      %s160 = sphi 0, %s159
      %s176 = sphi 0, %s160
      %s182 = sphi 0, %s184
      %s185 = sphi 0, %s182
      %s186 = sphi 0, %s185
      %s202 = sphi 0, %s186
    $region4: #{tpu_custom_call.1} parent=1 // loop_header_branch
      %24 = sbr.rel (%p22) target = $region8
    $region5: #{tpu_custom_call.1} parent=1 // loop_body
      %s26 = ssub.s32 %s21, 1
      %s27 = ssub.s32 %s21, 2
      %s28 = sadd.s32 %s21, 1
      %s30 = sadd.s32 %s29, 1
      %p33 = scmp.eq.s32.totalorder %s21, 1
      %p34 = scmp.ne.s32.totalorder %s29, %s31
      %p35 = scmp.eq.s32.totalorder %s21, 0
      %p36 = por %p34, %p35
      %p37 = scmp.ne.s32.totalorder %s29, %s31
      %p38 = scmp.eq.s32.totalorder %s26, 1
      %p39 = por %p37, %p38
      %p40 = scmp.ne.s32.totalorder %s31, %s32
      %p41 = scmp.eq.s32.totalorder %s26, 0
      %p42 = por %p40, %p41
      %p43 = scmp.ne.s32.totalorder %s31, %s32
      %p44 = scmp.eq.s32.totalorder %s27, 1
      %p45 = por %p43, %p44
      %p47 = scmp.ne.s32.totalorder %s32, %s46
      %p48 = scmp.eq.s32.totalorder %s27, 0
      %p49 = por %p47, %p48
      %s50 = ssub.s32 %s21, %s28
      %p51 = scmp.eq.s32.totalorder %s50, 0
      %s53 = sadd.s32 %s52, 1
      %s54 = scalar_select %p51, %s52, %s53
      %p57 = pneg %p51
      %p58 = scmp.eq.s32.totalorder %s21, 1
      %p59 = por %p57, %p58
      %p60 = scmp.ne.s32.totalorder %s52, %s55
      %p61 = scmp.eq.s32.totalorder %s21, 0
      %p62 = por %p60, %p61
      %p63 = scmp.ne.s32.totalorder %s52, %s55
      %p64 = scmp.eq.s32.totalorder %s26, 1
      %p65 = por %p63, %p64
      %p66 = scmp.ne.s32.totalorder %s55, %s56
      %p67 = scmp.eq.s32.totalorder %s26, 0
      %p68 = por %p66, %p67
      %p69 = scmp.ne.s32.totalorder %s55, %s56
      %p70 = scmp.eq.s32.totalorder %s27, 1
      %p71 = por %p69, %p70
      %p73 = scmp.ne.s32.totalorder %s56, %s72
      %p74 = scmp.eq.s32.totalorder %s27, 0
      %p75 = por %p73, %p74
      %s76 = ssub.s32 %s21, %s28
      %p77 = scmp.eq.s32.totalorder %s76, 0
      %s79 = sadd.s32 %s78, 1
      %s80 = scalar_select %p77, %s78, %s79
      %p83 = pneg %p77
      %p84 = scmp.eq.s32.totalorder %s21, 1
      %p85 = por %p83, %p84
      %p86 = scmp.ne.s32.totalorder %s78, %s81
      %p87 = scmp.eq.s32.totalorder %s21, 0
      %p88 = por %p86, %p87
      %p89 = scmp.ne.s32.totalorder %s78, %s81
      %p90 = scmp.eq.s32.totalorder %s26, 1
      %p91 = por %p89, %p90
      %p92 = scmp.ne.s32.totalorder %s81, %s82
      %p93 = scmp.eq.s32.totalorder %s26, 0
      %p94 = por %p92, %p93
      %p95 = scmp.ne.s32.totalorder %s81, %s82
      %p96 = scmp.eq.s32.totalorder %s27, 1
      %p97 = por %p95, %p96
      %p99 = scmp.ne.s32.totalorder %s82, %s98
      %p100 = scmp.eq.s32.totalorder %s27, 0
      %p101 = por %p99, %p100
      %s102 = ssub.s32 %s21, %s28
      %p103 = scmp.eq.s32.totalorder %s102, 0
      %s105 = sadd.s32 %s104, 1
      %s106 = scalar_select %p103, %s104, %s105
      %p109 = pneg %p103
      %p110 = scmp.eq.s32.totalorder %s21, 1
      %p111 = por %p109, %p110
      %p112 = scmp.ne.s32.totalorder %s104, %s107
      %p113 = scmp.eq.s32.totalorder %s21, 0
      %p114 = por %p112, %p113
      %p115 = scmp.ne.s32.totalorder %s104, %s107
      %p116 = scmp.eq.s32.totalorder %s26, 1
      %p117 = por %p115, %p116
      %p118 = scmp.ne.s32.totalorder %s107, %s108
      %p119 = scmp.eq.s32.totalorder %s26, 0
      %p120 = por %p118, %p119
      %p121 = scmp.ne.s32.totalorder %s107, %s108
      %p122 = scmp.eq.s32.totalorder %s27, 1
      %p123 = por %p121, %p122
      %p125 = scmp.ne.s32.totalorder %s108, %s124
      %p126 = scmp.eq.s32.totalorder %s27, 0
      %p127 = por %p125, %p126
      %s128 = ssub.s32 %s21, %s28
      %p129 = scmp.eq.s32.totalorder %s128, 0
      %s131 = sadd.s32 %s130, 1
      %s132 = scalar_select %p129, %s130, %s131
      %p135 = pneg %p129
      %p136 = scmp.eq.s32.totalorder %s21, 1
      %p137 = por %p135, %p136
      %p138 = scmp.ne.s32.totalorder %s130, %s133
      %p139 = scmp.eq.s32.totalorder %s21, 0
      %p140 = por %p138, %p139
      %p141 = scmp.ne.s32.totalorder %s130, %s133
      %p142 = scmp.eq.s32.totalorder %s26, 1
      %p143 = por %p141, %p142
      %p144 = scmp.ne.s32.totalorder %s133, %s134
      %p145 = scmp.eq.s32.totalorder %s26, 0
      %p146 = por %p144, %p145
      %p147 = scmp.ne.s32.totalorder %s133, %s134
      %p148 = scmp.eq.s32.totalorder %s27, 1
      %p149 = por %p147, %p148
      %p151 = scmp.ne.s32.totalorder %s134, %s150
      %p152 = scmp.eq.s32.totalorder %s27, 0
      %p153 = por %p151, %p152
      %s154 = ssub.s32 %s21, %s28
      %p155 = scmp.eq.s32.totalorder %s154, 0
      %s157 = sadd.s32 %s156, 1
      %s158 = scalar_select %p155, %s156, %s157
      %p161 = pneg %p155
      %p162 = scmp.eq.s32.totalorder %s21, 1
      %p163 = por %p161, %p162
      %p164 = scmp.ne.s32.totalorder %s156, %s159
      %p165 = scmp.eq.s32.totalorder %s21, 0
      %p166 = por %p164, %p165
      %p167 = scmp.ne.s32.totalorder %s156, %s159
      %p168 = scmp.eq.s32.totalorder %s26, 1
      %p169 = por %p167, %p168
      %p170 = scmp.ne.s32.totalorder %s159, %s160
      %p171 = scmp.eq.s32.totalorder %s26, 0
      %p172 = por %p170, %p171
      %p173 = scmp.ne.s32.totalorder %s159, %s160
      %p174 = scmp.eq.s32.totalorder %s27, 1
      %p175 = por %p173, %p174
      %p177 = scmp.ne.s32.totalorder %s160, %s176
      %p178 = scmp.eq.s32.totalorder %s27, 0
      %p179 = por %p177, %p178
      %s180 = ssub.s32 %s21, %s28
      %p181 = scmp.eq.s32.totalorder %s180, 0
      %s183 = sadd.s32 %s182, 1
      %s184 = scalar_select %p181, %s182, %s183
      %p187 = pneg %p181
      %p188 = scmp.eq.s32.totalorder %s21, 1
      %p189 = por %p187, %p188
      %p190 = scmp.ne.s32.totalorder %s182, %s185
      %p191 = scmp.eq.s32.totalorder %s21, 0
      %p192 = por %p190, %p191
      %p193 = scmp.ne.s32.totalorder %s182, %s185
      %p194 = scmp.eq.s32.totalorder %s26, 1
      %p195 = por %p193, %p194
      %p196 = scmp.ne.s32.totalorder %s185, %s186
      %p197 = scmp.eq.s32.totalorder %s26, 0
      %p198 = por %p196, %p197
      %p199 = scmp.ne.s32.totalorder %s185, %s186
      %p200 = scmp.eq.s32.totalorder %s27, 1
      %p201 = por %p199, %p200
      %p203 = scmp.ne.s32.totalorder %s186, %s202
      %p204 = scmp.eq.s32.totalorder %s27, 0
      %p205 = por %p203, %p204
      %p206 = scmp.le.s32.totalorder 1, %s21
      %p207 = scmp.lt.s32.totalorder %s21, 3
      %p208 = pnand %p206, %p207
      %p209 = pneg %p208
      // Predicated region
      $region9: #{tpu_custom_call.1} parent=5 // pred_check
        _
      $region10: #{tpu_custom_call.1} parent=5 // pred_check_branch
        %211 = sbr.rel (%p208) target = $region12
      $region11: #{tpu_custom_call.1} parent=5 // pred_region
        %s212 = ssub.s32 %s21, 1
        // Predicated region
        $region13: #{tpu_custom_call.1} parent=11 // pred_check
          %p213 = pneg %p42
        $region14: #{tpu_custom_call.1} parent=11 // pred_check_branch
          %215 = sbr.rel (%p213) target = $region16
        $region15: #{tpu_custom_call.1} parent=11 // pred_region
          %217 = vsyncadd [#allocation5], 0
          %s219 = sshll.u32 %s1, 4
          %s220 = int_to_ptr.hbm [resolvable:$true] %s219
          %s221 = sshll.u32 [#allocation4], 4
          %s222 = int_to_ptr.vmem [resolvable:$true] %s221
          %224 = dma.hbm_to_vmem [thread:$0]  %s220, 128, %s222, [#allocation5]
        $region16: #{tpu_custom_call.1} parent=11 // pred_fallthru
          _
      $region12: #{tpu_custom_call.1} parent=5 // pred_fallthru
        _
      %p225 = scmp.lt.s32.totalorder %s21, 2
      // Predicated region
      $region17: #{tpu_custom_call.1} parent=5 // pred_check
        %p226 = pneg %p225
      $region18: #{tpu_custom_call.1} parent=5 // pred_check_branch
        %228 = sbr.rel (%p226) target = $region20
      $region19: #{tpu_custom_call.1} parent=5 // pred_region
        // Predicated region
        $region21: #{tpu_custom_call.1} parent=19 // pred_check
          %p229 = pneg %p62
        $region22: #{tpu_custom_call.1} parent=19 // pred_check_branch
          %231 = sbr.rel (%p229) target = $region24
        $region23: #{tpu_custom_call.1} parent=19 // pred_region
          %s232 = smul.u32 16, %s21
          %p233 = scmp.lt.s32.totalorder %s232, 31
          %s234 = scalar_select %p233, %s232, 31
          %s235 = smul.addr %s234, 8
          %s236 = scalar_lea.vmem %s2, %s235
          %s237 = smul.u32 16, %s21
        $region24: #{tpu_custom_call.1} parent=19 // pred_fallthru
          _
        // Predicated region
        $region25: #{tpu_custom_call.1} parent=19 // pred_check
          %p238 = pneg %p88
        $region26: #{tpu_custom_call.1} parent=19 // pred_check_branch
          %240 = sbr.rel (%p238) target = $region28
        $region27: #{tpu_custom_call.1} parent=19 // pred_region
          %s241 = smul.u32 16, %s21
          %p242 = scmp.lt.s32.totalorder %s241, 31
          %s243 = scalar_select %p242, %s241, 31
          %s244 = smul.addr %s243, 8
          %s245 = scalar_lea.vmem %s3, %s244
          %s246 = smul.u32 16, %s21
        $region28: #{tpu_custom_call.1} parent=19 // pred_fallthru
          _
        // Predicated region
        $region29: #{tpu_custom_call.1} parent=19 // pred_check
          %p247 = pneg %p114
        $region30: #{tpu_custom_call.1} parent=19 // pred_check_branch
          %249 = sbr.rel (%p247) target = $region32
        $region31: #{tpu_custom_call.1} parent=19 // pred_region
          %p250 = scmp.lt.s32.totalorder %s21, 1
          %s251 = scalar_select %p250, %s21, 1
          %s252 = scalar_lea.vmem %s4, %s251
        $region32: #{tpu_custom_call.1} parent=19 // pred_fallthru
          _
        // Predicated region
        $region33: #{tpu_custom_call.1} parent=19 // pred_check
          %p253 = pneg %p140
        $region34: #{tpu_custom_call.1} parent=19 // pred_check_branch
          %255 = sbr.rel (%p253) target = $region36
        $region35: #{tpu_custom_call.1} parent=19 // pred_region
          %p256 = scmp.lt.s32.totalorder %s21, 1
          %s257 = scalar_select %p256, %s21, 1
          %s258 = scalar_lea.vmem %s5, %s257
        $region36: #{tpu_custom_call.1} parent=19 // pred_fallthru
          _
        // Predicated region
        $region37: #{tpu_custom_call.1} parent=19 // pred_check
          %p259 = pneg %p166
        $region38: #{tpu_custom_call.1} parent=19 // pred_check_branch
          %261 = sbr.rel (%p259) target = $region40
        $region39: #{tpu_custom_call.1} parent=19 // pred_region
          %s262 = sand.u32 %s156, 1
          %s263 = scalar_lea.sflag [#allocation8], %s262
          %s264 = sand.u32 %s156, 1
          %s265 = scalar_lea.vmem [#allocation7], %s264
          %267 = vsyncadd %s263, 0
          %s268 = scalar_lea.hbm %s6, %s21
          %s270 = sshll.u32 %s268, 4
          %s271 = int_to_ptr.hbm [resolvable:$true] %s270
          %s272 = sshll.u32 %s265, 4
          %s273 = int_to_ptr.vmem [resolvable:$true] %s272
          %275 = dma.hbm_to_vmem [thread:$0]  %s271, 16, %s273, %s263
        $region40: #{tpu_custom_call.1} parent=19 // pred_fallthru
          _
      $region20: #{tpu_custom_call.1} parent=5 // pred_fallthru
        _
      %p276 = scmp.le.s32.totalorder 1, %s21
      %p277 = scmp.lt.s32.totalorder %s21, 3
      %p278 = pnand %p276, %p277
      %p279 = pneg %p278
      // Predicated region
      $region41: #{tpu_custom_call.1} parent=5 // pred_check
        _
      $region42: #{tpu_custom_call.1} parent=5 // pred_check_branch
        %281 = sbr.rel (%p278) target = $region44
      $region43: #{tpu_custom_call.1} parent=5 // pred_region
        %s282 = ssub.s32 %s21, 1
        // Predicated region
        $region45: #{tpu_custom_call.1} parent=43 // pred_check
          %p283 = pneg %p42
        $region46: #{tpu_custom_call.1} parent=43 // pred_check_branch
          %285 = sbr.rel (%p283) target = $region48
        $region47: #{tpu_custom_call.1} parent=43 // pred_region
          %287 = dma.done [#allocation5], 128
        $region48: #{tpu_custom_call.1} parent=43 // pred_fallthru
          _
        %s288 = sand.u32 %s159, 1
        %s289 = scalar_lea.sflag [#allocation8], %s288
        %s290 = sand.u32 %s159, 1
        %s291 = scalar_lea.vmem [#allocation7], %s290
        // Predicated region
        $region49: #{tpu_custom_call.1} parent=43 // pred_check
          %p292 = pneg %p172
        $region50: #{tpu_custom_call.1} parent=43 // pred_check_branch
          %294 = sbr.rel (%p292) target = $region52
        $region51: #{tpu_custom_call.1} parent=43 // pred_region
          %296 = dma.done %s289, 16
        $region52: #{tpu_custom_call.1} parent=43 // pred_fallthru
          _
        %p297 = pneg %p42
        %p298 = pneg %p39
        %s299 = smul.u32 16, %s26
        %p300 = scmp.lt.s32.totalorder %s299, 31
        %s301 = scalar_select %p300, %s299, 31
        %s302 = smul.addr %s301, 8
        %s303 = scalar_lea.vmem %s2, %s302
        %p304 = pneg %p68
        %p305 = pneg %p65
        %s306 = smul.u32 16, %s26
        %p307 = scmp.lt.s32.totalorder %s306, 31
        %s308 = scalar_select %p307, %s306, 31
        %s309 = smul.addr %s308, 8
        %s310 = scalar_lea.vmem %s3, %s309
        %p311 = pneg %p94
        %p312 = pneg %p91
        %p313 = scmp.lt.s32.totalorder %s26, 1
        %s314 = scalar_select %p313, %s26, 1
        %s315 = scalar_lea.vmem %s4, %s314
        %p316 = pneg %p120
        %p317 = pneg %p117
        %p318 = scmp.lt.s32.totalorder %s26, 1
        %s319 = scalar_select %p318, %s26, 1
        %s320 = scalar_lea.vmem %s5, %s319
        %p321 = pneg %p146
        %p322 = pneg %p143
        %s323 = sand.u32 %s159, 1
        %s324 = scalar_lea.sflag [#allocation8], %s323
        %s325 = sand.u32 %s159, 1
        %s326 = scalar_lea.vmem [#allocation7], %s325
        %p327 = pneg %p172
        %p328 = pneg %p169
        %p329 = pneg %p198
        %p330 = pneg %p195
        %s331 = sand.u32 %s185, 1
        %s332 = scalar_lea.sflag [#allocation6], %s331
        %s333 = sand.u32 %s185, 1
        %s334 = smul.addr %s333, 8
        %s335 = scalar_lea.vmem [#allocation9], %s334
        %s336 = smul.u32 16, %s26
        %p337 = scmp.lt.s32.totalorder %s336, 31
        %s338 = scalar_select %p337, %s336, 31
        %s339 = smul.addr %s338, 8
        %s340 = scalar_lea.vmem %s2, %s339
        %s341 = smul.u32 16, %s26
        %s342 = smul.u32 16, %s26
        %p343 = scmp.lt.s32.totalorder %s342, 31
        %s344 = scalar_select %p343, %s342, 31
        %s345 = smul.addr %s344, 8
        %s346 = scalar_lea.vmem %s3, %s345
        %s347 = smul.u32 16, %s26
        %p348 = scmp.lt.s32.totalorder %s26, 1
        %s349 = scalar_select %p348, %s26, 1
        %s350 = scalar_lea.vmem %s4, %s349
        %p351 = scmp.lt.s32.totalorder %s26, 1
        %s352 = scalar_select %p351, %s26, 1
        %s353 = scalar_lea.vmem %s5, %s352
        %v354 = vld [vmem:[#allocation4] sm:$0xff]
        %v355 = vld [vmem:[%s340] sm:$0xff]
        %v356 = vld [vmem:[%s340 + $0x8] sm:$0xff]
        %v357 = vld [vmem:[%s340 + $0x10] sm:$0xff]
        %v358 = vld [vmem:[%s340 + $0x18] sm:$0xff]
        %v359 = vld [vmem:[%s340 + $0x20] sm:$0xff]
        %v360 = vld [vmem:[%s340 + $0x28] sm:$0xff]
        %v361 = vld [vmem:[%s340 + $0x30] sm:$0xff]
        %v362 = vld [vmem:[%s340 + $0x38] sm:$0xff]
        %v363 = vld [vmem:[%s340 + $0x40] sm:$0xff]
        %v364 = vld [vmem:[%s340 + $0x48] sm:$0xff]
        %v365 = vld [vmem:[%s340 + $0x50] sm:$0xff]
        %v366 = vld [vmem:[%s340 + $0x58] sm:$0xff]
        %v367 = vld [vmem:[%s340 + $0x60] sm:$0xff]
        %v368 = vld [vmem:[%s340 + $0x68] sm:$0xff]
        %v369 = vld [vmem:[%s340 + $0x70] sm:$0xff]
        %v370 = vld [vmem:[%s340 + $0x78] sm:$0xff]
        %v371 = vld [vmem:[%s346] sm:$0xff]
        %v372 = vld [vmem:[%s346 + $0x8] sm:$0xff]
        %v373 = vld [vmem:[%s346 + $0x10] sm:$0xff]
        %v374 = vld [vmem:[%s346 + $0x18] sm:$0xff]
        %v375 = vld [vmem:[%s346 + $0x20] sm:$0xff]
        %v376 = vld [vmem:[%s346 + $0x28] sm:$0xff]
        %v377 = vld [vmem:[%s346 + $0x30] sm:$0xff]
        %v378 = vld [vmem:[%s346 + $0x38] sm:$0xff]
        %v379 = vld [vmem:[%s346 + $0x40] sm:$0xff]
        %v380 = vld [vmem:[%s346 + $0x48] sm:$0xff]
        %v381 = vld [vmem:[%s346 + $0x50] sm:$0xff]
        %v382 = vld [vmem:[%s346 + $0x58] sm:$0xff]
        %v383 = vld [vmem:[%s346 + $0x60] sm:$0xff]
        %v384 = vld [vmem:[%s346 + $0x68] sm:$0xff]
        %v385 = vld [vmem:[%s346 + $0x70] sm:$0xff]
        %v386 = vld [vmem:[%s346 + $0x78] sm:$0xff]
        %v387 = vmul.f32 %v355, %v355
        %v388 = vmul.f32 %v356, %v356
        %v389 = vmul.f32 %v357, %v357
        %v390 = vmul.f32 %v358, %v358
        %v391 = vmul.f32 %v359, %v359
        %v392 = vmul.f32 %v360, %v360
        %v393 = vmul.f32 %v361, %v361
        %v394 = vmul.f32 %v362, %v362
        %v395 = vmul.f32 %v363, %v363
        %v396 = vmul.f32 %v364, %v364
        %v397 = vmul.f32 %v365, %v365
        %v398 = vmul.f32 %v366, %v366
        %v399 = vmul.f32 %v367, %v367
        %v400 = vmul.f32 %v368, %v368
        %v401 = vmul.f32 %v369, %v369
        %v402 = vmul.f32 %v370, %v370
        %403 = vadd.xlane.f32.xlu0 %v387
        %v404 = vpop.xlane.xlu0 %403
        %405 = vadd.xlane.f32.xlu0 %v388
        %v406 = vpop.xlane.xlu0 %405
        %407 = vadd.xlane.f32.xlu0 %v389
        %v408 = vpop.xlane.xlu0 %407
        %409 = vadd.xlane.f32.xlu0 %v390
        %v410 = vpop.xlane.xlu0 %409
        %411 = vadd.xlane.f32.xlu0 %v391
        %v412 = vpop.xlane.xlu0 %411
        %413 = vadd.xlane.f32.xlu0 %v392
        %v414 = vpop.xlane.xlu0 %413
        %415 = vadd.xlane.f32.xlu0 %v393
        %v416 = vpop.xlane.xlu0 %415
        %417 = vadd.xlane.f32.xlu0 %v394
        %v418 = vpop.xlane.xlu0 %417
        %419 = vadd.xlane.f32.xlu0 %v395
        %v420 = vpop.xlane.xlu0 %419
        %421 = vadd.xlane.f32.xlu0 %v396
        %v422 = vpop.xlane.xlu0 %421
        %423 = vadd.xlane.f32.xlu0 %v397
        %v424 = vpop.xlane.xlu0 %423
        %425 = vadd.xlane.f32.xlu0 %v398
        %v426 = vpop.xlane.xlu0 %425
        %427 = vadd.xlane.f32.xlu0 %v399
        %v428 = vpop.xlane.xlu0 %427
        %429 = vadd.xlane.f32.xlu0 %v400
        %v430 = vpop.xlane.xlu0 %429
        %431 = vadd.xlane.f32.xlu0 %v401
        %v432 = vpop.xlane.xlu0 %431
        %433 = vadd.xlane.f32.xlu0 %v402
        %v434 = vpop.xlane.xlu0 %433
        %v435 = vrsqrt.pop %v404
        %v436 = vmul.f32 %v435, %v404
        %v437 = vmul.f32 %v436, %v435
        %v438 = vmul.f32 0.5, %v437
        %v439 = vsub.f32 1.5, %v438
        %v440 = vmul.f32 %v435, %v439
        %vm441 = vweird.f32 %v404
        %vm442 = vweird.f32 %v435
        %vm443 = vmor %vm441, %vm442
        %v444 = vsel %vm443, %v435, %v440
        %v445 = vrsqrt.pop %v406
        %v446 = vmul.f32 %v445, %v406
        %v447 = vmul.f32 %v446, %v445
        %v448 = vmul.f32 0.5, %v447
        %v449 = vsub.f32 1.5, %v448
        %v450 = vmul.f32 %v445, %v449
        %vm451 = vweird.f32 %v406
        %vm452 = vweird.f32 %v445
        %vm453 = vmor %vm451, %vm452
        %v454 = vsel %vm453, %v445, %v450
        %v455 = vrsqrt.pop %v408
        %v456 = vmul.f32 %v455, %v408
        %v457 = vmul.f32 %v456, %v455
        %v458 = vmul.f32 0.5, %v457
        %v459 = vsub.f32 1.5, %v458
        %v460 = vmul.f32 %v455, %v459
        %vm461 = vweird.f32 %v408
        %vm462 = vweird.f32 %v455
        %vm463 = vmor %vm461, %vm462
        %v464 = vsel %vm463, %v455, %v460
        %v465 = vrsqrt.pop %v410
        %v466 = vmul.f32 %v465, %v410
        %v467 = vmul.f32 %v466, %v465
        %v468 = vmul.f32 0.5, %v467
        %v469 = vsub.f32 1.5, %v468
        %v470 = vmul.f32 %v465, %v469
        %vm471 = vweird.f32 %v410
        %vm472 = vweird.f32 %v465
        %vm473 = vmor %vm471, %vm472
        %v474 = vsel %vm473, %v465, %v470
        %v475 = vrsqrt.pop %v412
        %v476 = vmul.f32 %v475, %v412
        %v477 = vmul.f32 %v476, %v475
        %v478 = vmul.f32 0.5, %v477
        %v479 = vsub.f32 1.5, %v478
        %v480 = vmul.f32 %v475, %v479
        %vm481 = vweird.f32 %v412
        %vm482 = vweird.f32 %v475
        %vm483 = vmor %vm481, %vm482
        %v484 = vsel %vm483, %v475, %v480
        %v485 = vrsqrt.pop %v414
        %v486 = vmul.f32 %v485, %v414
        %v487 = vmul.f32 %v486, %v485
        %v488 = vmul.f32 0.5, %v487
        %v489 = vsub.f32 1.5, %v488
        %v490 = vmul.f32 %v485, %v489
        %vm491 = vweird.f32 %v414
        %vm492 = vweird.f32 %v485
        %vm493 = vmor %vm491, %vm492
        %v494 = vsel %vm493, %v485, %v490
        %v495 = vrsqrt.pop %v416
        %v496 = vmul.f32 %v495, %v416
        %v497 = vmul.f32 %v496, %v495
        %v498 = vmul.f32 0.5, %v497
        %v499 = vsub.f32 1.5, %v498
        %v500 = vmul.f32 %v495, %v499
        %vm501 = vweird.f32 %v416
        %vm502 = vweird.f32 %v495
        %vm503 = vmor %vm501, %vm502
        %v504 = vsel %vm503, %v495, %v500
        %v505 = vrsqrt.pop %v418
        %v506 = vmul.f32 %v505, %v418
        %v507 = vmul.f32 %v506, %v505
        %v508 = vmul.f32 0.5, %v507
        %v509 = vsub.f32 1.5, %v508
        %v510 = vmul.f32 %v505, %v509
        %vm511 = vweird.f32 %v418
        %vm512 = vweird.f32 %v505
        %vm513 = vmor %vm511, %vm512
        %v514 = vsel %vm513, %v505, %v510
        %v515 = vrsqrt.pop %v420
        %v516 = vmul.f32 %v515, %v420
        %v517 = vmul.f32 %v516, %v515
        %v518 = vmul.f32 0.5, %v517
        %v519 = vsub.f32 1.5, %v518
        %v520 = vmul.f32 %v515, %v519
        %vm521 = vweird.f32 %v420
        %vm522 = vweird.f32 %v515
        %vm523 = vmor %vm521, %vm522
        %v524 = vsel %vm523, %v515, %v520
        %v525 = vrsqrt.pop %v422
        %v526 = vmul.f32 %v525, %v422
        %v527 = vmul.f32 %v526, %v525
        %v528 = vmul.f32 0.5, %v527
        %v529 = vsub.f32 1.5, %v528
        %v530 = vmul.f32 %v525, %v529
        %vm531 = vweird.f32 %v422
        %vm532 = vweird.f32 %v525
        %vm533 = vmor %vm531, %vm532
        %v534 = vsel %vm533, %v525, %v530
        %v535 = vrsqrt.pop %v424
        %v536 = vmul.f32 %v535, %v424
        %v537 = vmul.f32 %v536, %v535
        %v538 = vmul.f32 0.5, %v537
        %v539 = vsub.f32 1.5, %v538
        %v540 = vmul.f32 %v535, %v539
        %vm541 = vweird.f32 %v424
        %vm542 = vweird.f32 %v535
        %vm543 = vmor %vm541, %vm542
        %v544 = vsel %vm543, %v535, %v540
        %v545 = vrsqrt.pop %v426
        %v546 = vmul.f32 %v545, %v426
        %v547 = vmul.f32 %v546, %v545
        %v548 = vmul.f32 0.5, %v547
        %v549 = vsub.f32 1.5, %v548
        %v550 = vmul.f32 %v545, %v549
        %vm551 = vweird.f32 %v426
        %vm552 = vweird.f32 %v545
        %vm553 = vmor %vm551, %vm552
        %v554 = vsel %vm553, %v545, %v550
        %v555 = vrsqrt.pop %v428
        %v556 = vmul.f32 %v555, %v428
        %v557 = vmul.f32 %v556, %v555
        %v558 = vmul.f32 0.5, %v557
        %v559 = vsub.f32 1.5, %v558
        %v560 = vmul.f32 %v555, %v559
        %vm561 = vweird.f32 %v428
        %vm562 = vweird.f32 %v555
        %vm563 = vmor %vm561, %vm562
        %v564 = vsel %vm563, %v555, %v560
        %v565 = vrsqrt.pop %v430
        %v566 = vmul.f32 %v565, %v430
        %v567 = vmul.f32 %v566, %v565
        %v568 = vmul.f32 0.5, %v567
        %v569 = vsub.f32 1.5, %v568
        %v570 = vmul.f32 %v565, %v569
        %vm571 = vweird.f32 %v430
        %vm572 = vweird.f32 %v565
        %vm573 = vmor %vm571, %vm572
        %v574 = vsel %vm573, %v565, %v570
        %v575 = vrsqrt.pop %v432
        %v576 = vmul.f32 %v575, %v432
        %v577 = vmul.f32 %v576, %v575
        %v578 = vmul.f32 0.5, %v577
        %v579 = vsub.f32 1.5, %v578
        %v580 = vmul.f32 %v575, %v579
        %vm581 = vweird.f32 %v432
        %vm582 = vweird.f32 %v575
        %vm583 = vmor %vm581, %vm582
        %v584 = vsel %vm583, %v575, %v580
        %v585 = vrsqrt.pop %v434
        %v586 = vmul.f32 %v585, %v434
        %v587 = vmul.f32 %v586, %v585
        %v588 = vmul.f32 0.5, %v587
        %v589 = vsub.f32 1.5, %v588
        %v590 = vmul.f32 %v585, %v589
        %vm591 = vweird.f32 %v434
        %vm592 = vweird.f32 %v585
        %vm593 = vmor %vm591, %vm592
        %v594 = vsel %vm593, %v585, %v590
        %v595 = vmul.f32 %v371, %v444
        %v596 = vmul.f32 %v372, %v454
        %v597 = vmul.f32 %v373, %v464
        %v598 = vmul.f32 %v374, %v474
        %v599 = vmul.f32 %v375, %v484
        %v600 = vmul.f32 %v376, %v494
        %v601 = vmul.f32 %v377, %v504
        %v602 = vmul.f32 %v378, %v514
        %v603 = vmul.f32 %v379, %v524
        %v604 = vmul.f32 %v380, %v534
        %v605 = vmul.f32 %v381, %v544
        %v606 = vmul.f32 %v382, %v554
        %v607 = vmul.f32 %v383, %v564
        %v608 = vmul.f32 %v384, %v574
        %v609 = vmul.f32 %v385, %v584
        %v610 = vmul.f32 %v386, %v594
        %612 = vset.pattern.permute.xlu0 0
        %613 = vperm.xlu0 %612, %v595
        %v614 = vpop.permute.xlu0 %613
        %617 = vset.pattern.permute.xlu0 0
        %618 = vperm.xlu0 %617, %v596
        %v619 = vpop.permute.xlu0 %618
        %622 = vset.pattern.permute.xlu0 0
        %623 = vperm.xlu0 %622, %v597
        %v624 = vpop.permute.xlu0 %623
        %627 = vset.pattern.permute.xlu0 0
        %628 = vperm.xlu0 %627, %v598
        %v629 = vpop.permute.xlu0 %628
        %632 = vset.pattern.permute.xlu0 0
        %633 = vperm.xlu0 %632, %v599
        %v634 = vpop.permute.xlu0 %633
        %637 = vset.pattern.permute.xlu0 0
        %638 = vperm.xlu0 %637, %v600
        %v639 = vpop.permute.xlu0 %638
        %642 = vset.pattern.permute.xlu0 0
        %643 = vperm.xlu0 %642, %v601
        %v644 = vpop.permute.xlu0 %643
        %647 = vset.pattern.permute.xlu0 0
        %648 = vperm.xlu0 %647, %v602
        %v649 = vpop.permute.xlu0 %648
        %652 = vset.pattern.permute.xlu0 0
        %653 = vperm.xlu0 %652, %v603
        %v654 = vpop.permute.xlu0 %653
        %657 = vset.pattern.permute.xlu0 0
        %658 = vperm.xlu0 %657, %v604
        %v659 = vpop.permute.xlu0 %658
        %662 = vset.pattern.permute.xlu0 0
        %663 = vperm.xlu0 %662, %v605
        %v664 = vpop.permute.xlu0 %663
        %667 = vset.pattern.permute.xlu0 0
        %668 = vperm.xlu0 %667, %v606
        %v669 = vpop.permute.xlu0 %668
        %672 = vset.pattern.permute.xlu0 0
        %673 = vperm.xlu0 %672, %v607
        %v674 = vpop.permute.xlu0 %673
        %677 = vset.pattern.permute.xlu0 0
        %678 = vperm.xlu0 %677, %v608
        %v679 = vpop.permute.xlu0 %678
        %682 = vset.pattern.permute.xlu0 0
        %683 = vperm.xlu0 %682, %v609
        %v684 = vpop.permute.xlu0 %683
        %687 = vset.pattern.permute.xlu0 0
        %688 = vperm.xlu0 %687, %v610
        %v689 = vpop.permute.xlu0 %688
        %v691 = vmul.f32 %v355, %v614
        %v692 = vmul.f32 %v356, %v619
        %v693 = vmul.f32 %v357, %v624
        %v694 = vmul.f32 %v358, %v629
        %v695 = vmul.f32 %v359, %v634
        %v696 = vmul.f32 %v360, %v639
        %v697 = vmul.f32 %v361, %v644
        %v698 = vmul.f32 %v362, %v649
        %v699 = vmul.f32 %v363, %v654
        %v700 = vmul.f32 %v364, %v659
        %v701 = vmul.f32 %v365, %v664
        %v702 = vmul.f32 %v366, %v669
        %v703 = vmul.f32 %v367, %v674
        %v704 = vmul.f32 %v368, %v679
        %v705 = vmul.f32 %v369, %v684
        %v706 = vmul.f32 %v370, %v689
        %v707 = vpack.c.bf16 %v354, %v354
        %v708 = vpack.c.bf16 %v692, %v691
        %v709 = vpack.c.bf16 %v694, %v693
        %v710 = vpack.c.bf16 %v696, %v695
        %v711 = vpack.c.bf16 %v698, %v697
        %v712 = vpack.c.bf16 %v700, %v699
        %v713 = vpack.c.bf16 %v702, %v701
        %v714 = vpack.c.bf16 %v704, %v703
        %v715 = vpack.c.bf16 %v706, %v705
        %v716 = vld [vmem:[%s350] sm:$0x1]
        %v718 = vperm.slane %v716, 0
        %720 = vmatpush.bf16.xpose.msra.mxu0 %v715
        %721 = vmatpush.bf16.xpose.msra.mxu0 %v714
        %722 = vmatpush.bf16.xpose.msra.mxu0 %v713
        %723 = vmatpush.bf16.xpose.msra.mxu0 %v712
        %724 = vmatpush.bf16.xpose.msra.mxu0 %v711
        %725 = vmatpush.bf16.xpose.msra.mxu0 %v710
        %726 = vmatpush.bf16.xpose.msra.mxu0 %v709
        %727 = vmatpush.bf16.xpose.msra.mxu0 %v708
        %728 = vmatmul.bf16.gmra.mxu0 %v707
        %v729 = vpop.f32.mrf.mxu0
        %v730 = vadd.f32 %v718, %v729
        %v731 = vpop.f32.mrf.mxu0
        %732 = vdwg.mxu0
        %v733 = vmax.f32 %v730, 0.0
        %v734 = vrot.slane %v733, 4
        %v735 = vadd.f32 %v733, %v734
        %v736 = vrot.slane %v735, 2
        %v737 = vadd.f32 %v735, %v736
        %v738 = vrot.slane %v737, 1
        %v739 = vadd.f32 %v737, %v738
        %v740 = vmul.f32 %v733, %v733
        %v741 = vrot.slane %v740, 4
        %v742 = vadd.f32 %v740, %v741
        %v743 = vrot.slane %v742, 2
        %v744 = vadd.f32 %v742, %v743
        %v745 = vrot.slane %v744, 1
        %v746 = vadd.f32 %v744, %v745
        %v747 = vmul.f32 %v739, 0.125
        %v748 = vmul.f32 %v746, 0.125
        %v749 = vmul.f32 %v747, %v747
        %v750 = vsub.f32 %v748, %v749
        %v751 = vmax.f32 %v750, 0.0
        %v752 = vsub.f32 %v733, %v747
        %v753 = vadd.f32 %v751, 1e-05
        %v754 = vrsqrt.pop %v753
        %v755 = vmul.f32 %v754, %v753
        %v756 = vmul.f32 %v755, %v754
        %v757 = vmul.f32 0.5, %v756
        %v758 = vsub.f32 1.5, %v757
        %v759 = vmul.f32 %v754, %v758
        %vm760 = vweird.f32 %v753
        %vm761 = vweird.f32 %v754
        %vm762 = vmor %vm760, %vm761
        %v763 = vsel %vm762, %v754, %v759
        %v764 = vmul.f32 %v752, %v763
        %v765 = vld [vmem:[%s353] sm:$0x1]
        %v767 = vperm.slane %v765, 0
        %v769 = vmul.f32 %v764, %v767
        %v770 = vld [vmem:[%s291] sm:$0x1]
        %v772 = vperm.slane %v770, 0
        %v774 = vadd.f32 %v769, %v772
        %v775 = vlaneseq
        %v776 = vshrl.u32 %v775, 7
        %v777 = vlaneseq
        %v778 = vand.u32 %v777, 127
        %s779 = smul.u32 %s26, 128
        %v780 = vstv %s779
        %v781 = vadd.s32 %v778, %v780
        %v782 = vmul.u32 %v776, 256
        %v783 = vadd.s32 %v782, %v781
        %s784 = sld [smem:[#allocation3]]
        %s785 = smul.u32 %s784, 1000003
        %v786 = vstv %s785
        %v787 = vadd.s32 %v783, %v786
        %v788 = vshrl.u32 %v787, 16
        %v789 = vxor.u32 %v787, %v788
        %v790 = vmul.u32 %v789, 2246822507
        %v791 = vshrl.u32 %v790, 13
        %v792 = vxor.u32 %v790, %v791
        %v793 = vmul.u32 %v792, 3266489909
        %v794 = vshrl.u32 %v793, 16
        %v795 = vxor.u32 %v793, %v794
        %v796 = vshrl.u32 %v795, 9
        %v797 = vor.u32 %v796, 1065353216
        %v799 = vsub.f32 %v797, 1.0
        %vm800 = vcmp.lt.f32.partialorder %v799, 0.9
        %v801 = vmul.f32 %v774, 1.1111112
        %v802 = vsel %vm800, %v801, 0.0
        %803 = vst [vmem:[%s335] sm:$0xff] %v802
        %s804 = sand.u32 %s185, 1
        %s805 = scalar_lea.sflag [#allocation6], %s804
        %s806 = sand.u32 %s185, 1
        %s807 = smul.addr %s806, 8
        %s808 = scalar_lea.vmem [#allocation9], %s807
        // Predicated region
        $region53: #{tpu_custom_call.1} parent=43 // pred_check
          %p809 = pneg %p195
        $region54: #{tpu_custom_call.1} parent=43 // pred_check_branch
          %811 = sbr.rel (%p809) target = $region56
        $region55: #{tpu_custom_call.1} parent=43 // pred_region
          %813 = vsyncadd %s805, 0
          %s814 = smul.addr %s26, 8
          %s815 = scalar_lea.hbm %s7, %s814
          %s817 = sshll.u32 %s808, 4
          %s818 = int_to_ptr.vmem [resolvable:$true] %s817
          %s819 = sshll.u32 %s815, 4
          %s820 = int_to_ptr.hbm [resolvable:$true] %s819
          %822 = dma.vmem_to_hbm [thread:$0]  %s818, 128, %s820, %s805
        $region56: #{tpu_custom_call.1} parent=43 // pred_fallthru
          _
      $region44: #{tpu_custom_call.1} parent=5 // pred_fallthru
        _
      %p823 = scmp.le.s32.totalorder 2, %s21
      // Predicated region
      $region57: #{tpu_custom_call.1} parent=5 // pred_check
        %p824 = pneg %p823
      $region58: #{tpu_custom_call.1} parent=5 // pred_check_branch
        %826 = sbr.rel (%p824) target = $region60
      $region59: #{tpu_custom_call.1} parent=5 // pred_region
        %s827 = ssub.s32 %s21, 2
        // Predicated region
        $region61: #{tpu_custom_call.1} parent=59 // pred_check
          %p828 = pneg %p201
        $region62: #{tpu_custom_call.1} parent=59 // pred_check_branch
          %830 = sbr.rel (%p828) target = $region64
        $region63: #{tpu_custom_call.1} parent=59 // pred_region
          %s831 = sand.u32 %s186, 1
          %s832 = scalar_lea.sflag [#allocation6], %s831
          %s833 = sand.u32 %s186, 1
          %s834 = smul.addr %s833, 8
          %s835 = scalar_lea.vmem [#allocation9], %s834
          %837 = dma.done %s832, 128
        $region64: #{tpu_custom_call.1} parent=59 // pred_fallthru
          _
      $region60: #{tpu_custom_call.1} parent=5 // pred_fallthru
        _
    $region6: #{tpu_custom_call.1} parent=1 // loop_footer
      %s25 = sadd.s32 1, %s21
    $region7: #{tpu_custom_call.1} parent=1 // loop_footer_branch
      %20 = sbr.rel target = $region3
    $region8: #{tpu_custom_call.1} parent=1 // loop_exit
      _
    %838 = vsyncpa [#allocation5], 1
    %s839 = scalar_lea.sflag [#allocation5], 1
    %840 = vsyncpa %s839, 1
    %841 = vsyncpa [#allocation8], 1
    %s842 = scalar_lea.sflag [#allocation8], 1
    %843 = vsyncpa %s842, 1
    %844 = vsyncpa [#allocation6], 1
    %s845 = scalar_lea.sflag [#allocation6], 1
    %846 = vsyncpa %s845, 1

</llo_original>
